<compile_context>
chip_gen: v7x
topology: tpu7x:2x2x1
jax: 0.10.0
libtpu: 0.0.40
codegen_flags: <defaults>
</compile_context>

<pallas_src>
import functools

import jax
import jax.numpy as jnp
from jax import lax
from jax.experimental import pallas as pl
from jax.experimental.pallas import tpu as pltpu

_LANE = 128
_SUBLANE = 8
_MIN_GRID_STEPS = 8  # keep the BlockSpec pipeline (and v7x's 2 TCs) fed


def _round_up(x, m):
    return -(-x // m) * m


def _cdiv(a, b):
    return -(-a // b)


def _sublane_multiple(itemsize):
    # sub-32-bit dtypes pack along sublanes: f32 -> 8, bf16 -> 16, int8/fp8 -> 32
    return max(_SUBLANE, 32 // itemsize)


@functools.lru_cache(maxsize=1)
def _vmem_capacity():
    try:
        return int(pltpu.get_tpu_info().vmem_capacity_bytes)
    except Exception:
        return 64 << 20  # conservative default (v7x per-TC VMEM)


def _block_vmem_budget():
    # per-buffer target: ~4 MiB on 128 MiB VMEM parts (v5e/v6e), ~2 MiB on v7x
    return (4 << 20) if _vmem_capacity() >= (96 << 20) else (2 << 20)


def _vmem_limit_for(block_padded_elems, itemsize):
    # in + out double-buffered (x dtype) + f32 temporaries materialized in-kernel
    io_bytes = 2 * 2 * block_padded_elems * itemsize
    tmp_bytes = 4 * block_padded_elems * 4
    need = io_bytes + tmp_bytes + (4 << 20)
    cap = max(32 << 20, min(_vmem_capacity() - (16 << 20), 100 << 20))
    return int(min(max(need, 32 << 20), cap))


# -----------------------------------------------------------------------------
# Tile pickers
# -----------------------------------------------------------------------------
def _pick_row_tile(R, C, itemsize):
    sub = _sublane_multiple(itemsize)
    c_pad = _round_up(C, _LANE)
    tm = _block_vmem_budget() // (c_pad * itemsize)
    tm = max(sub, (tm // sub) * sub)
    # never let the adaptive tile collapse the grid to ~1 step
    target = _round_up(_cdiv(R, _MIN_GRID_STEPS), sub)
    tm = min(tm, max(target, sub))
    if tm >= R:
        return R  # tiny problem: single block (block dim == full dim is legal)
    return tm


def _pick_lane_tile(N, C, B, itemsize):
    if N <= _LANE:
        return N  # tiny spatial extent: single (possibly masked) lane tile
    sub = _sublane_multiple(itemsize)
    c_pad = _round_up(C, sub)
    tl = _block_vmem_budget() // (c_pad * itemsize)
    tl = max(_LANE, (tl // _LANE) * _LANE)
    n_floor = (N // _LANE) * _LANE  # largest lane-dense tile not exceeding N
    # aim for >= _MIN_GRID_STEPS total grid steps across (B, spatial)
    want_spatial = max(1, _cdiv(_MIN_GRID_STEPS, max(B, 1)))
    if want_spatial > 1:
        tl = min(tl, max(_round_up(_cdiv(N, want_spatial), _LANE), _LANE))
    return max(min(tl, n_floor), _LANE)


# -----------------------------------------------------------------------------
# channels_last, generic fallback: normalize over the LAST axis of (R, C)
# -----------------------------------------------------------------------------
def _ln_last_kernel(x_ref, w_ref, b_ref, o_ref, *, eps):
    # x_ref: (TM, C), w_ref/b_ref: (1, C) f32
    x = x_ref[...].astype(jnp.float32)
    mean = jnp.mean(x, axis=-1, keepdims=True)
    xc = x - mean
    var = jnp.mean(xc * xc, axis=-1, keepdims=True)
    inv = lax.rsqrt(var + eps)
    o_ref[...] = (xc * inv * w_ref[...] + b_ref[...]).astype(o_ref.dtype)


def _layer_norm_last_generic(x2d, weight, bias, eps, tile_rows=None):
    R, C = x2d.shape
    itemsize = x2d.dtype.itemsize
    if tile_rows is None:
        tm = _pick_row_tile(R, C, itemsize)
    else:
        tm = tile_rows if tile_rows < R else R

    grid = (_cdiv(R, tm),)  # ragged last block handled by Pallas masking
    sub = _sublane_multiple(itemsize)
    block_elems = _round_up(tm, sub) * _round_up(C, _LANE)

    w2 = weight.astype(jnp.float32).reshape(1, C)
    b2 = bias.astype(jnp.float32).reshape(1, C)

    return pl.pallas_call(
        functools.partial(_ln_last_kernel, eps=eps),
        out_shape=jax.ShapeDtypeStruct((R, C), x2d.dtype),
        grid_spec=pltpu.PrefetchScalarGridSpec(
            num_scalar_prefetch=0,
            grid=grid,
            in_specs=[
                pl.BlockSpec((tm, C), lambda i: (i, 0)),
                pl.BlockSpec((1, C), lambda i: (0, 0)),
                pl.BlockSpec((1, C), lambda i: (0, 0)),
            ],
            out_specs=pl.BlockSpec((tm, C), lambda i: (i, 0)),
        ),
        compiler_params=pltpu.CompilerParams(
            dimension_semantics=("parallel",),
            vmem_limit_bytes=_vmem_limit_for(block_elems, itemsize),
        ),
    )(x2d, w2, b2)


# -----------------------------------------------------------------------------
# channels_last, lane-dense repack for small C dividing 128:
# (R, C) viewed as (R*C/128, 128); segmented mean/var via a constant 128x128
# block-diagonal averaging matmul on the MXU.  Unmasked lane-dense stores.
# -----------------------------------------------------------------------------
def _ln_last_packed_kernel(x_ref, a_ref, w_ref, b_ref, o_ref, *, eps):
    # x_ref: (TM, 128), each lane-row packs 128/C complete normalization rows.
    # a_ref: (128, 128) block-diagonal averaging matrix (value 1/C inside segments).
    x = x_ref[...].astype(jnp.float32)
    a = a_ref[...]
    mean = jnp.dot(x, a, preferred_element_type=jnp.float32)      # per-segment mean
    xc = x - mean
    var = jnp.dot(xc * xc, a, preferred_element_type=jnp.float32)  # per-segment var
    inv = lax.rsqrt(var + eps)
    o_ref[...] = (xc * inv * w_ref[...] + b_ref[...]).astype(o_ref.dtype)


def _layer_norm_last_packed(x2d, weight, bias, eps):
    R, C = x2d.shape
    G = _LANE // C           # normalization rows per packed lane-row
    Rp = R // G
    xp = x2d.reshape(Rp, _LANE)  # free row-major reshape, no data movement

    itemsize = x2d.dtype.itemsize
    tm = _pick_row_tile(Rp, _LANE, itemsize)
    grid = (_cdiv(Rp, tm),)
    sub = _sublane_multiple(itemsize)
    block_elems = _round_up(tm, sub) * _LANE

    lane = jnp.arange(_LANE)
    seg = lane // C
    a = (seg[:, None] == seg[None, :]).astype(jnp.float32) * (1.0 / C)
    w_t = jnp.tile(weight.astype(jnp.float32).reshape(-1), G).reshape(1, _LANE)
    b_t = jnp.tile(bias.astype(jnp.float32).reshape(-1), G).reshape(1, _LANE)

    out = pl.pallas_call(
        functools.partial(_ln_last_packed_kernel, eps=eps),
        out_shape=jax.ShapeDtypeStruct((Rp, _LANE), x2d.dtype),
        grid_spec=pltpu.PrefetchScalarGridSpec(
            num_scalar_prefetch=0,
            grid=grid,
            in_specs=[
                pl.BlockSpec((tm, _LANE), lambda i: (i, 0)),
                pl.BlockSpec((_LANE, _LANE), lambda i: (0, 0)),
                pl.BlockSpec((1, _LANE), lambda i: (0, 0)),
                pl.BlockSpec((1, _LANE), lambda i: (0, 0)),
            ],
            out_specs=pl.BlockSpec((tm, _LANE), lambda i: (i, 0)),
        ),
        compiler_params=pltpu.CompilerParams(
            dimension_semantics=("parallel",),
            vmem_limit_bytes=_vmem_limit_for(block_elems, itemsize),
        ),
    )(xp, a, w_t, b_t)
    return out.reshape(R, C)


def _layer_norm_last(x2d, weight, bias, eps, tile_rows=None):
    """LayerNorm over the last axis of a (R, C) array."""
    R, C = x2d.shape
    if (tile_rows is None and 0 < C < _LANE and _LANE % C == 0
            and R % (_LANE // C) == 0):
        return _layer_norm_last_packed(x2d, weight, bias, eps)
    return _layer_norm_last_generic(x2d, weight, bias, eps, tile_rows=tile_rows)


# -----------------------------------------------------------------------------
# channels_first: x viewed as (B, C, N), normalize over C (sublane axis),
# spatial N = H*W on the 128-lane axis.  No HBM transposes.
# -----------------------------------------------------------------------------
def _ln_cf_kernel(x_ref, w_ref, b_ref, o_ref, *, eps):
    # x_ref: (1, C, TL), w_ref/b_ref: (1, C, 1) f32
    x = x_ref[...].astype(jnp.float32)
    mean = jnp.mean(x, axis=1, keepdims=True)   # sublane reduction
    xc = x - mean
    var = jnp.mean(xc * xc, axis=1, keepdims=True)
    inv = lax.rsqrt(var + eps)
    o_ref[...] = (xc * inv * w_ref[...] + b_ref[...]).astype(o_ref.dtype)


def _layer_norm_channels_first(x, weight, bias, eps, tile_lanes=None):
    """LayerNorm over axis 1 of a (B, C, H, W) array, no transposes."""
    B, C, H, W = x.shape
    N = H * W
    itemsize = x.dtype.itemsize
    x3 = x.reshape(B, C, N)  # contiguous reshape, no data movement

    if tile_lanes is None:
        tl = _pick_lane_tile(N, C, B, itemsize)
    else:
        tl = tile_lanes if tile_lanes < N else N

    grid = (B, _cdiv(N, tl))
    sub = _sublane_multiple(itemsize)
    block_elems = _round_up(C, sub) * _round_up(tl, _LANE)

    w3 = weight.astype(jnp.float32).reshape(1, C, 1)
    b3 = bias.astype(jnp.float32).reshape(1, C, 1)

    out = pl.pallas_call(
        functools.partial(_ln_cf_kernel, eps=eps),
        out_shape=jax.ShapeDtypeStruct((B, C, N), x.dtype),
        grid_spec=pltpu.PrefetchScalarGridSpec(
            num_scalar_prefetch=0,
            grid=grid,
            in_specs=[
                pl.BlockSpec((1, C, tl), lambda b, j: (b, 0, j)),
                pl.BlockSpec((1, C, 1), lambda b, j: (0, 0, 0)),
                pl.BlockSpec((1, C, 1), lambda b, j: (0, 0, 0)),
            ],
            out_specs=pl.BlockSpec((1, C, tl), lambda b, j: (b, 0, j)),
        ),
        compiler_params=pltpu.CompilerParams(
            dimension_semantics=("parallel", "parallel"),
            vmem_limit_bytes=_vmem_limit_for(block_elems, itemsize),
        ),
    )(x3, w3, b3)
    return out.reshape(B, C, H, W)


class LayerNormPallas:
    """Mirrors models/encoders/DFormer.py::LayerNorm forward semantics."""

    def __init__(self, normalized_shape, eps=1e-6, data_format="channels_last"):
        if data_format not in ("channels_last", "channels_first"):
            raise NotImplementedError
        self.weight = jnp.ones((normalized_shape,), dtype=jnp.float32)
        self.bias = jnp.zeros((normalized_shape,), dtype=jnp.float32)
        self.eps = eps
        self.data_format = data_format
        self.normalized_shape = normalized_shape

    def __call__(self, x):
        C = self.normalized_shape
        if self.data_format == "channels_last":
            orig_shape = x.shape
            assert orig_shape[-1] == C
            x2d = x.reshape(-1, C)
            out = _layer_norm_last(x2d, self.weight, self.bias, self.eps)
            return out.reshape(orig_shape)
        else:  # channels_first, x: (B, C, H, W)
            assert x.shape[1] == C
            return _layer_norm_channels_first(x, self.weight, self.bias, self.eps)


# -----------------------------------------------------------------------------
# references (pure jnp)
# -----------------------------------------------------------------------------
def _reference_channels_first(x, weight, bias, eps):
    u = jnp.mean(x, axis=1, keepdims=True)
    s = jnp.mean((x - u) ** 2, axis=1, keepdims=True)
    xn = (x - u) / jnp.sqrt(s + eps)
    return weight[None, :, None, None] * xn + bias[None, :, None, None]


def _reference_channels_last(x, weight, bias, eps):
    u = jnp.mean(x, axis=-1, keepdims=True)
    s = jnp.mean((x - u) ** 2, axis=-1, keepdims=True)
    xn = (x - u) / jnp.sqrt(s + eps)
    return xn * weight + bias


if __name__ == "__main__":
    key = jax.random.PRNGKey(0)
    k1, k2, k3, k4, k5, k6 = jax.random.split(key, 6)

    # channels_first: NCHW (B=2, C=4, H=16, W=16) -- lane-dense, no transposes
    x_cf = jax.random.normal(k1, (2, 4, 16, 16), dtype=jnp.float32)
    ln_cf = LayerNormPallas(4, eps=1e-6, data_format="channels_first")
    out_cf = jax.block_until_ready(ln_cf(x_cf))
    ref_cf = _reference_channels_first(x_cf, ln_cf.weight, ln_cf.bias, ln_cf.eps)
    assert out_cf.shape == x_cf.shape
    assert jnp.allclose(out_cf, ref_cf, atol=1e-5, rtol=1e-5)

    # channels_last small C -> lane-dense packed path (C=4, 32 rows per vreg row)
    x_cl = jax.random.normal(k2, (2, 16, 16, 4), dtype=jnp.float32)
    ln_cl = LayerNormPallas(4, eps=1e-6, data_format="channels_last")
    out_cl = jax.block_until_ready(ln_cl(x_cl))
    ref_cl = _reference_channels_last(x_cl, ln_cl.weight, ln_cl.bias, ln_cl.eps)
    assert out_cl.shape == x_cl.shape
    assert jnp.allclose(out_cl, ref_cl, atol=1e-5, rtol=1e-5)

    # channels_last packed path with C=64 (2 rows per vreg row)
    x_cl64 = jax.random.normal(k3, (2, 8, 8, 64), dtype=jnp.float32)
    ln_cl64 = LayerNormPallas(64, eps=1e-6, data_format="channels_last")
    out_cl64 = jax.block_until_ready(ln_cl64(x_cl64))
    ref_cl64 = _reference_channels_last(x_cl64, ln_cl64.weight, ln_cl64.bias, ln_cl64.eps)
    assert jnp.allclose(out_cl64, ref_cl64, atol=1e-5, rtol=1e-5)

    # channels_last bf16 packed path (dtype-aware sublane rounding)
    x_bf = jax.random.normal(k4, (2, 16, 16, 4), dtype=jnp.float32).astype(jnp.bfloat16)
    ln_bf = LayerNormPallas(4, eps=1e-6, data_format="channels_last")
    out_bf = jax.block_until_ready(ln_bf(x_bf))
    ref_bf = _reference_channels_last(
        x_bf.astype(jnp.float32), ln_bf.weight, ln_bf.bias, ln_bf.eps)
    assert out_bf.dtype == jnp.bfloat16
    assert jnp.allclose(out_bf.astype(jnp.float32), ref_bf, atol=5e-2, rtol=5e-2)

    # ragged / non-packable fallback (R=37 not divisible by 128/C): generic path
    x_rag = jax.random.normal(k5, (37, 8), dtype=jnp.float32)
    ln_r = LayerNormPallas(8, eps=1e-6, data_format="channels_last")
    out_rag = jax.block_until_ready(
        _layer_norm_last(x_rag, ln_r.weight, ln_r.bias, ln_r.eps, tile_rows=16))
    ref_rag = _reference_channels_last(x_rag, ln_r.weight, ln_r.bias, ln_r.eps)
    assert jnp.allclose(out_rag, ref_rag, atol=1e-5, rtol=1e-5)

    # channels_first with ragged spatial extent (N=320, lane tile 128, masked tail)
    x_rag_cf = jax.random.normal(k6, (1, 8, 16, 20), dtype=jnp.float32)
    ln_rcf = LayerNormPallas(8, eps=1e-6, data_format="channels_first")
    out_rag_cf = jax.block_until_ready(
        _layer_norm_channels_first(
            x_rag_cf, ln_rcf.weight, ln_rcf.bias, ln_rcf.eps, tile_lanes=128))
    ref_rag_cf = _reference_channels_first(
        x_rag_cf, ln_rcf.weight, ln_rcf.bias, ln_rcf.eps)
    assert jnp.allclose(out_rag_cf, ref_rag_cf, atol=1e-5, rtol=1e-5)

    print("KERNEL_OK")
</pallas_src>

<mosaic_0001>
module attributes {stable_mosaic.version = 11 : i64} {
  func.func @_ln_cf_kernel(%arg0: i32, %arg1: i32, %arg2: memref<1x4x128xf32, #tpu.memory_space<vmem>>, %arg3: memref<1x4x1xf32, #tpu.memory_space<vmem>>, %arg4: memref<1x4x1xf32, #tpu.memory_space<vmem>>, %arg5: memref<1x4x128xf32, #tpu.memory_space<vmem>>) attributes {dimension_semantics = [#tpu.dimension_semantics<parallel>, #tpu.dimension_semantics<parallel>], iteration_bounds = array<i64: 2, 2>, scalar_prefetch = 0 : i64, scratch_operands = 0 : i64, tpu.core_type = #tpu.core_type<tc>, window_params = [{transform_indices = @transform_0, window_bounds = array<i64: 1, 4, 128>}, {pipeline_mode = #tpu.pipeline_mode<synchronous>, transform_indices = @transform_1, window_bounds = array<i64: 1, 4, 1>}, {pipeline_mode = #tpu.pipeline_mode<synchronous>, transform_indices = @transform_2, window_bounds = array<i64: 1, 4, 1>}, {transform_indices = @transform_3, window_bounds = array<i64: 1, 4, 128>}]} {
    %c0 = arith.constant 0 : index
    %c0_0 = arith.constant 0 : index
    %c0_1 = arith.constant 0 : index
    %0 = vector.load %arg2[%c0, %c0_0, %c0_1] : memref<1x4x128xf32, #tpu.memory_space<vmem>>, vector<1x4x128xf32>
    %cst = arith.constant dense<0.000000e+00> : vector<1x128xf32>
    %1 = vector.multi_reduction <add>, %0, %cst [1] : vector<1x4x128xf32> to vector<1x128xf32>
    %2 = vector.shape_cast %1 : vector<1x128xf32> to vector<1x1x128xf32>
    %cst_2 = arith.constant 4.000000e+00 : f32
    %3 = vector.broadcast %cst_2 : f32 to vector<1x1x128xf32>
    %4 = arith.divf %2, %3 : vector<1x1x128xf32>
    %5 = vector.broadcast %4 : vector<1x1x128xf32> to vector<1x4x128xf32>
    %6 = arith.subf %0, %5 : vector<1x4x128xf32>
    %7 = arith.mulf %6, %6 : vector<1x4x128xf32>
    %cst_3 = arith.constant dense<0.000000e+00> : vector<1x128xf32>
    %8 = vector.multi_reduction <add>, %7, %cst_3 [1] : vector<1x4x128xf32> to vector<1x128xf32>
    %9 = vector.shape_cast %8 : vector<1x128xf32> to vector<1x1x128xf32>
    %cst_4 = arith.constant 4.000000e+00 : f32
    %10 = vector.broadcast %cst_4 : f32 to vector<1x1x128xf32>
    %11 = arith.divf %9, %10 : vector<1x1x128xf32>
    %cst_5 = arith.constant 9.99999997E-7 : f32
    %12 = vector.broadcast %cst_5 : f32 to vector<1x1x128xf32>
    %13 = arith.addf %11, %12 : vector<1x1x128xf32>
    %14 = math.rsqrt %13 : vector<1x1x128xf32>
    %15 = vector.broadcast %14 : vector<1x1x128xf32> to vector<1x4x128xf32>
    %16 = arith.mulf %6, %15 : vector<1x4x128xf32>
    %c0_6 = arith.constant 0 : index
    %c0_7 = arith.constant 0 : index
    %c0_8 = arith.constant 0 : index
    %17 = vector.load %arg3[%c0_6, %c0_7, %c0_8] : memref<1x4x1xf32, #tpu.memory_space<vmem>>, vector<1x4x1xf32>
    %18 = vector.broadcast %17 : vector<1x4x1xf32> to vector<1x4x128xf32>
    %19 = arith.mulf %16, %18 : vector<1x4x128xf32>
    %c0_9 = arith.constant 0 : index
    %c0_10 = arith.constant 0 : index
    %c0_11 = arith.constant 0 : index
    %20 = vector.load %arg4[%c0_9, %c0_10, %c0_11] : memref<1x4x1xf32, #tpu.memory_space<vmem>>, vector<1x4x1xf32>
    %21 = vector.broadcast %20 : vector<1x4x1xf32> to vector<1x4x128xf32>
    %22 = arith.addf %19, %21 : vector<1x4x128xf32>
    %c0_12 = arith.constant 0 : index
    %c0_13 = arith.constant 0 : index
    %c0_14 = arith.constant 0 : index
    %23 = vector.load %arg5[%c0_12, %c0_13, %c0_14] : memref<1x4x128xf32, #tpu.memory_space<vmem>>, vector<1x4x128xf32>
    tpu.vector_store %arg5[%c0_12, %c0_13, %c0_14], %22 {strides = array<i32>} : memref<1x4x128xf32, #tpu.memory_space<vmem>>, vector<1x4x128xf32>,
    return
  }
  func.func @transform_0(%arg0: i32, %arg1: i32) -> (i32, i32, i32) {
    %c0_i32 = arith.constant 0 : i32
    %c0_i32_0 = arith.constant 0 : i32
    return %arg0, %c0_i32, %arg1 : i32, i32, i32
  }
  func.func @transform_1(%arg0: i32, %arg1: i32) -> (i32, i32, i32) {
    %c0_i32 = arith.constant 0 : i32
    %c0_i32_0 = arith.constant 0 : i32
    %c0_i32_1 = arith.constant 0 : i32
    %c0_i32_2 = arith.constant 0 : i32
    return %c0_i32, %c0_i32_0, %c0_i32_1 : i32, i32, i32
  }
  func.func @transform_2(%arg0: i32, %arg1: i32) -> (i32, i32, i32) {
    %c0_i32 = arith.constant 0 : i32
    %c0_i32_0 = arith.constant 0 : i32
    %c0_i32_1 = arith.constant 0 : i32
    %c0_i32_2 = arith.constant 0 : i32
    return %c0_i32, %c0_i32_0, %c0_i32_1 : i32, i32, i32
  }
  func.func @transform_3(%arg0: i32, %arg1: i32) -> (i32, i32, i32) {
    %c0_i32 = arith.constant 0 : i32
    %c0_i32_0 = arith.constant 0 : i32
    return %arg0, %c0_i32, %arg1 : i32, i32, i32
  }
}

</mosaic_0001>

<llo_original>
// kernel: tpu_custom_call.1
$region0: #{tpu_custom_call.1}
  #allocation0 [shape = 'u32[]', space=smem, size = 0x4, offset = 0x4, fixed_abs, tag = 'smem constant byte address 0x4 - core index']
  #allocation1 [shape = 'u32[144,128]{1,0:T(1,128)}', space=vmem, size = 0x12000, scoped, tag = 'internal scratch']
  %s0 = inlined_call_operand.hbm [shape: f32[2,4,256], index: 0, kind: input, shape index: {}]
  %s1 = inlined_call_operand.vmem [shape: f32[1,4,1], index: 1, kind: input, shape index: {}]
  %s2 = inlined_call_operand.vmem [shape: f32[1,4,1], index: 2, kind: input, shape index: {}]
  %s3 = inlined_call_operand.hbm [shape: f32[2,4,256], index: 3, kind: output, shape index: {}]
  %s4 = sld [smem:[#allocation0]]
  $region49: #{tpu_custom_call.1} parent=0
    _
  %s6 = ssub.s32 1, %s4
  %s7 = scalar_select 0, %s6, %s4
  $region1: #{tpu_custom_call.1} parent=0
    #allocation2 [shape = 'u8[4096]{0}', space=vmem, size = 0x1000, scoped, tag = 'input window, operand 0']
    #allocation3 [shape = 's32[2]{0}', space=sflag, size = 0x8, scoped, tag = 'scoped memory for tpu_custom_call.1']
    #allocation4 [shape = 's32[2]{0}', space=sflag, size = 0x8, scoped, tag = 'scoped memory for tpu_custom_call.1']
    #allocation5 [shape = 'u8[4096]{0}', space=vmem, size = 0x1000, scoped, tag = 'output window, operand 0']
    %8 = vsyncpa [#allocation3], 0
    %s9 = scalar_lea.sflag [#allocation3], 1
    %10 = vsyncpa %s9, 0
    %11 = vsyncpa [#allocation4], 0
    %s12 = scalar_lea.sflag [#allocation4], 1
    %13 = vsyncpa %s12, 0
    loop: start=0, step=1, limit=6
    $region2: #{tpu_custom_call.1} parent=1 // loop_pre_header
      _
    $region3: #{tpu_custom_call.1} parent=1 // loop_header
      %s15 = sphi 0, %s19
      %p16 = scmp.ge.s32.totalorder %s15, 6
      %s22 = sphi 0, %s34
      %s23 = sphi 0, %s30
      %s24 = sphi 0, %s22
      %s25 = sphi 0, %s23
      %s26 = sphi 0, %s24
      %s27 = sphi 0, %s25
      %s39 = sphi 0, %s41
      %s42 = sphi 0, %s39
      %s43 = sphi 0, %s42
      %s59 = sphi 0, %s43
      %s63 = sphi 0, %s63
      %s65 = sphi 0, %s63
      %s66 = sphi 0, %s65
      %s80 = sphi 0, %s66
      %s84 = sphi 0, %s84
      %s86 = sphi 0, %s84
      %s87 = sphi 0, %s86
      %s101 = sphi 0, %s87
      %s109 = sphi 0, %s111
      %s112 = sphi 0, %s109
      %s113 = sphi 0, %s112
      %s129 = sphi 0, %s113
    $region4: #{tpu_custom_call.1} parent=1 // loop_header_branch
      %18 = sbr.rel (%p16) target = $region8
    $region5: #{tpu_custom_call.1} parent=1 // loop_body
      %s20 = ssub.s32 %s15, 1
      %s21 = ssub.s32 %s15, 2
      %s28 = sadd.s32 1, %s23
      %p29 = scmp.ge.s32.totalorder %s28, 2
      %s30 = scalar_select %p29, 0, %s28
      %s31 = sadd.s32 1, %s22
      %s32 = scalar_select %p29, %s31, %s22
      %p33 = scmp.ge.s32.totalorder %s32, 2
      %s34 = scalar_select %p33, 0, %s32
      %s35 = ssub.s32 %s22, %s34
      %s36 = ssub.s32 %s23, %s30
      %s37 = sor.u32 %s35, %s36
      %p38 = scmp.eq.s32.totalorder %s37, 0
      %s40 = sadd.s32 %s39, 1
      %s41 = scalar_select %p38, %s39, %s40
      %p44 = pneg %p38
      %p45 = scmp.eq.s32.totalorder %s15, 3
      %p46 = por %p44, %p45
      %p47 = scmp.ne.s32.totalorder %s39, %s42
      %p48 = scmp.eq.s32.totalorder %s15, 0
      %p49 = por %p47, %p48
      %p50 = scmp.ne.s32.totalorder %s39, %s42
      %p51 = scmp.eq.s32.totalorder %s20, 3
      %p52 = por %p50, %p51
      %p53 = scmp.ne.s32.totalorder %s42, %s43
      %p54 = scmp.eq.s32.totalorder %s20, 0
      %p55 = por %p53, %p54
      %p56 = scmp.ne.s32.totalorder %s42, %s43
      %p57 = scmp.eq.s32.totalorder %s21, 3
      %p58 = por %p56, %p57
      %p60 = scmp.ne.s32.totalorder %s43, %s59
      %p61 = scmp.eq.s32.totalorder %s21, 0
      %p62 = por %p60, %p61
      %s64 = sadd.s32 %s63, 1
      %p67 = scmp.eq.s32.totalorder %s15, 3
      %p68 = scmp.ne.s32.totalorder %s63, %s65
      %p69 = scmp.eq.s32.totalorder %s15, 0
      %p70 = por %p68, %p69
      %p71 = scmp.ne.s32.totalorder %s63, %s65
      %p72 = scmp.eq.s32.totalorder %s20, 3
      %p73 = por %p71, %p72
      %p74 = scmp.ne.s32.totalorder %s65, %s66
      %p75 = scmp.eq.s32.totalorder %s20, 0
      %p76 = por %p74, %p75
      %p77 = scmp.ne.s32.totalorder %s65, %s66
      %p78 = scmp.eq.s32.totalorder %s21, 3
      %p79 = por %p77, %p78
      %p81 = scmp.ne.s32.totalorder %s66, %s80
      %p82 = scmp.eq.s32.totalorder %s21, 0
      %p83 = por %p81, %p82
      %s85 = sadd.s32 %s84, 1
      %p88 = scmp.eq.s32.totalorder %s15, 3
      %p89 = scmp.ne.s32.totalorder %s84, %s86
      %p90 = scmp.eq.s32.totalorder %s15, 0
      %p91 = por %p89, %p90
      %p92 = scmp.ne.s32.totalorder %s84, %s86
      %p93 = scmp.eq.s32.totalorder %s20, 3
      %p94 = por %p92, %p93
      %p95 = scmp.ne.s32.totalorder %s86, %s87
      %p96 = scmp.eq.s32.totalorder %s20, 0
      %p97 = por %p95, %p96
      %p98 = scmp.ne.s32.totalorder %s86, %s87
      %p99 = scmp.eq.s32.totalorder %s21, 3
      %p100 = por %p98, %p99
      %p102 = scmp.ne.s32.totalorder %s87, %s101
      %p103 = scmp.eq.s32.totalorder %s21, 0
      %p104 = por %p102, %p103
      %s105 = ssub.s32 %s22, %s34
      %s106 = ssub.s32 %s23, %s30
      %s107 = sor.u32 %s105, %s106
      %p108 = scmp.eq.s32.totalorder %s107, 0
      %s110 = sadd.s32 %s109, 1
      %s111 = scalar_select %p108, %s109, %s110
      %p114 = pneg %p108
      %p115 = scmp.eq.s32.totalorder %s15, 3
      %p116 = por %p114, %p115
      %p117 = scmp.ne.s32.totalorder %s109, %s112
      %p118 = scmp.eq.s32.totalorder %s15, 0
      %p119 = por %p117, %p118
      %p120 = scmp.ne.s32.totalorder %s109, %s112
      %p121 = scmp.eq.s32.totalorder %s20, 3
      %p122 = por %p120, %p121
      %p123 = scmp.ne.s32.totalorder %s112, %s113
      %p124 = scmp.eq.s32.totalorder %s20, 0
      %p125 = por %p123, %p124
      %p126 = scmp.ne.s32.totalorder %s112, %s113
      %p127 = scmp.eq.s32.totalorder %s21, 3
      %p128 = por %p126, %p127
      %p130 = scmp.ne.s32.totalorder %s113, %s129
      %p131 = scmp.eq.s32.totalorder %s21, 0
      %p132 = por %p130, %p131
      %p133 = scmp.le.s32.totalorder 1, %s15
      %p134 = scmp.lt.s32.totalorder %s15, 5
      %p135 = pnand %p133, %p134
      %p136 = pneg %p135
      // Predicated region
      $region9: #{tpu_custom_call.1} parent=5 // pred_check
        _
      $region10: #{tpu_custom_call.1} parent=5 // pred_check_branch
        %138 = sbr.rel (%p135) target = $region12
      $region11: #{tpu_custom_call.1} parent=5 // pred_region
        %s139 = ssub.s32 %s15, 1
        // Predicated region
        $region13: #{tpu_custom_call.1} parent=11 // pred_check
          %p140 = pneg %p76
        $region14: #{tpu_custom_call.1} parent=11 // pred_check_branch
          %142 = sbr.rel (%p140) target = $region16
        $region15: #{tpu_custom_call.1} parent=11 // pred_region
          _
        $region16: #{tpu_custom_call.1} parent=11 // pred_fallthru
          _
        // Predicated region
        $region17: #{tpu_custom_call.1} parent=11 // pred_check
          %p143 = pneg %p97
        $region18: #{tpu_custom_call.1} parent=11 // pred_check_branch
          %145 = sbr.rel (%p143) target = $region20
        $region19: #{tpu_custom_call.1} parent=11 // pred_region
          _
        $region20: #{tpu_custom_call.1} parent=11 // pred_fallthru
          _
      $region12: #{tpu_custom_call.1} parent=5 // pred_fallthru
        _
      %p146 = scmp.lt.s32.totalorder %s15, 4
      // Predicated region
      $region21: #{tpu_custom_call.1} parent=5 // pred_check
        %p147 = pneg %p146
      $region22: #{tpu_custom_call.1} parent=5 // pred_check_branch
        %149 = sbr.rel (%p147) target = $region24
      $region23: #{tpu_custom_call.1} parent=5 // pred_region
        // Predicated region
        $region25: #{tpu_custom_call.1} parent=23 // pred_check
          %p150 = pneg %p49
        $region26: #{tpu_custom_call.1} parent=23 // pred_check_branch
          %152 = sbr.rel (%p150) target = $region28
        $region27: #{tpu_custom_call.1} parent=23 // pred_region
          %s153 = sand.u32 %s39, 1
          %s154 = scalar_lea.sflag [#allocation3], %s153
          %s155 = sand.u32 %s39, 1
          %s156 = smul.addr %s155, 4
          %s157 = scalar_lea.vmem [#allocation2], %s156
          %s159 = ssub.s32 64, 64
          %160 = vsyncadd %s154, %s159
          %s161 = smul.addr %s22, 2
          %s162 = sadd.s32 %s23, %s161
          %s163 = smul.addr %s162, 64
          %s164 = scalar_lea.hbm %s0, %s163
          %s166 = sshll.u32 %s157, 4
          %s167 = int_to_ptr.vmem [resolvable:$true] %s166
          %169 = dma.hbm_to_vmem [thread:$0]  %s164, 64, %s167, %s154
        $region28: #{tpu_custom_call.1} parent=23 // pred_fallthru
          _
      $region24: #{tpu_custom_call.1} parent=5 // pred_fallthru
        _
      %p170 = scmp.le.s32.totalorder 1, %s15
      %p171 = scmp.lt.s32.totalorder %s15, 5
      %p172 = pnand %p170, %p171
      %p173 = pneg %p172
      // Predicated region
      $region29: #{tpu_custom_call.1} parent=5 // pred_check
        _
      $region30: #{tpu_custom_call.1} parent=5 // pred_check_branch
        %175 = sbr.rel (%p172) target = $region32
      $region31: #{tpu_custom_call.1} parent=5 // pred_region
        %s176 = ssub.s32 %s15, 1
        %s177 = sand.u32 %s42, 1
        %s178 = scalar_lea.sflag [#allocation3], %s177
        %s179 = sand.u32 %s42, 1
        %s180 = smul.addr %s179, 4
        %s181 = scalar_lea.vmem [#allocation2], %s180
        // Predicated region
        $region33: #{tpu_custom_call.1} parent=31 // pred_check
          %p182 = pneg %p55
        $region34: #{tpu_custom_call.1} parent=31 // pred_check_branch
          %184 = sbr.rel (%p182) target = $region36
        $region35: #{tpu_custom_call.1} parent=31 // pred_region
          %185 = dma.done %s178, 64
        $region36: #{tpu_custom_call.1} parent=31 // pred_fallthru
          _
        %s186 = sand.u32 %s42, 1
        %s187 = scalar_lea.sflag [#allocation3], %s186
        %s188 = sand.u32 %s42, 1
        %s189 = smul.addr %s188, 4
        %s190 = scalar_lea.vmem [#allocation2], %s189
        %p191 = pneg %p55
        %p192 = pneg %p52
        %p193 = pneg %p76
        %p194 = pneg %p73
        %p195 = pneg %p97
        %p196 = pneg %p94
        %p197 = pneg %p125
        %p198 = pneg %p122
        %s199 = sand.u32 %s112, 1
        %s200 = scalar_lea.sflag [#allocation4], %s199
        %s201 = sand.u32 %s112, 1
        %s202 = smul.addr %s201, 4
        %s203 = scalar_lea.vmem [#allocation5], %s202
        %v204 = vld [vmem:[%s181] sm:$0xf]
        %vm205 = vcmask 1043456
        %v206 = vsel %vm205, %v204, 0.0
        %v207 = vrot.slane %v206, 4
        %v208 = vadd.f32 %v206, %v207
        %v209 = vrot.slane %v208, 2
        %v210 = vadd.f32 %v208, %v209
        %v211 = vrot.slane %v210, 1
        %v212 = vadd.f32 %v210, %v211
        %v213 = vrcp.pop 4.0
        %v214 = vmul.f32 %v212, %v213
        %v215 = vsub.f32 %v204, %v214
        %v216 = vmul.f32 %v215, %v215
        %v217 = vsel %vm205, %v216, 0.0
        %v218 = vrot.slane %v217, 4
        %v219 = vadd.f32 %v217, %v218
        %v220 = vrot.slane %v219, 2
        %v221 = vadd.f32 %v219, %v220
        %v222 = vrot.slane %v221, 1
        %v223 = vadd.f32 %v221, %v222
        %v224 = vmul.f32 %v223, %v213
        %v225 = vadd.f32 %v224, 1e-06
        %v226 = vrsqrt.pop %v225
        %v227 = vmul.f32 %v215, %v226
        %v228 = vld [vmem:[%s1] sm:$0xf]
        %230 = vset.pattern.permute.xlu0 0
        %231 = vperm.xlu0 %230, %v228
        %v232 = vpop.permute.xlu0 %231
        %v234 = vmul.f32 %v227, %v232
        %v235 = vld [vmem:[%s2] sm:$0xf]
        %237 = vset.pattern.permute.xlu0 0
        %238 = vperm.xlu0 %237, %v235
        %v239 = vpop.permute.xlu0 %238
        %v241 = vadd.f32 %v234, %v239
        %242 = vst [vmem:[%s203] sm:$0xf] %v241
        %s243 = sand.u32 %s112, 1
        %s244 = scalar_lea.sflag [#allocation4], %s243
        %s245 = sand.u32 %s112, 1
        %s246 = smul.addr %s245, 4
        %s247 = scalar_lea.vmem [#allocation5], %s246
        // Predicated region
        $region37: #{tpu_custom_call.1} parent=31 // pred_check
          %p248 = pneg %p122
        $region38: #{tpu_custom_call.1} parent=31 // pred_check_branch
          %250 = sbr.rel (%p248) target = $region40
        $region39: #{tpu_custom_call.1} parent=31 // pred_region
          %s252 = ssub.s32 64, 64
          %253 = vsyncadd %s244, %s252
          %s254 = smul.addr %s24, 2
          %s255 = sadd.s32 %s25, %s254
          %s256 = smul.addr %s255, 64
          %s257 = scalar_lea.hbm %s3, %s256
          %s259 = sshll.u32 %s247, 4
          %s260 = int_to_ptr.vmem [resolvable:$true] %s259
          %262 = dma.vmem_to_hbm [thread:$0]  %s260, 64, %s257, %s244
        $region40: #{tpu_custom_call.1} parent=31 // pred_fallthru
          _
      $region32: #{tpu_custom_call.1} parent=5 // pred_fallthru
        _
      %p263 = scmp.le.s32.totalorder 2, %s15
      // Predicated region
      $region41: #{tpu_custom_call.1} parent=5 // pred_check
        %p264 = pneg %p263
      $region42: #{tpu_custom_call.1} parent=5 // pred_check_branch
        %266 = sbr.rel (%p264) target = $region44
      $region43: #{tpu_custom_call.1} parent=5 // pred_region
        %s267 = ssub.s32 %s15, 2
        // Predicated region
        $region45: #{tpu_custom_call.1} parent=43 // pred_check
          %p268 = pneg %p128
        $region46: #{tpu_custom_call.1} parent=43 // pred_check_branch
          %270 = sbr.rel (%p268) target = $region48
        $region47: #{tpu_custom_call.1} parent=43 // pred_region
          %s271 = sand.u32 %s113, 1
          %s272 = scalar_lea.sflag [#allocation4], %s271
          %s273 = sand.u32 %s113, 1
          %s274 = smul.addr %s273, 4
          %s275 = scalar_lea.vmem [#allocation5], %s274
          %276 = dma.done %s272, 64
        $region48: #{tpu_custom_call.1} parent=43 // pred_fallthru
          _
      $region44: #{tpu_custom_call.1} parent=5 // pred_fallthru
        _
    $region6: #{tpu_custom_call.1} parent=1 // loop_footer
      %s19 = sadd.s32 1, %s15
    $region7: #{tpu_custom_call.1} parent=1 // loop_footer_branch
      %14 = sbr.rel target = $region3
    $region8: #{tpu_custom_call.1} parent=1 // loop_exit
      _
    %277 = vsyncpa [#allocation3], 1
    %s278 = scalar_lea.sflag [#allocation3], 1
    %279 = vsyncpa %s278, 1
    %280 = vsyncpa [#allocation4], 1
    %s281 = scalar_lea.sflag [#allocation4], 1
    %282 = vsyncpa %s281, 1

</llo_original>
